<compile_context>
chip_gen: v6e
topology: v6e:2x2x1
jax: 0.10.0
libtpu: 0.0.40
codegen_flags: <defaults>
</compile_context>

<pallas_src>
import functools

import jax
import jax.numpy as jnp
from jax.experimental import pallas as pl
from jax.experimental.pallas import tpu as pltpu


# ---------------------------------------------------------------------------
# tiling / compiler-param helpers
# ---------------------------------------------------------------------------
def _pick_rows(n_rows, row_bytes, budget, multiple):
    """Pick a row-tile size.

    Largest `multiple`-aligned divisor of n_rows whose block fits `budget`;
    prefers >=2 grid steps (so both v7x TensorCores get work) once blocks are
    at least 1 MiB.  Falls back to the full row count (single block)."""
    cands = [multiple << k for k in range(14, -1, -1)]      # multiple*16384 .. multiple
    fitting = [c for c in cands
               if c <= n_rows and n_rows % c == 0 and c * row_bytes <= budget]
    if not fitting:
        # TODO(synk): also tile the trailing (feature/pixel) axis when a single
        # row exceeds the block budget; not needed for the shapes used here.
        return n_rows
    for c in fitting:                                       # descending
        if n_rows // c >= 2 and c * row_bytes >= (1 << 20):
            return c                                        # >=2 parallel grid steps
    return fitting[0]


def _lane_dense_2d(size):
    """Factor `size` as (rows, cols) with cols a large multiple of 128."""
    for cols in (4096, 2048, 1024, 512, 256, 128):
        if size % cols == 0:
            return size // cols, cols
    # TODO(synk): sizes with no multiple-of-128 factor fall back to one wide row.
    return 1, size


def _mosaic_params(n_streams, block_bytes):
    """dimension_semantics + an explicit VMEM budget for double-buffered blocks."""
    need = 2 * n_streams * block_bytes + (4 << 20)          # 2x buffers + headroom
    limit = int(min(48 << 20, max(32 << 20, need)))         # <=48 MiB (v7x has 64 MiB)
    return pltpu.CompilerParams(
        dimension_semantics=("parallel",),                  # independent row blocks
        vmem_limit_bytes=limit)


# ---------------------------------------------------------------------------
# Kernel 1 (forward): asymmetric SimSiam loss
#   -(normalize(p, dim=1) * normalize(z, dim=1)).sum(1).mean()    (z detached)
# Each grid step reduces its (tm, D) row block to one partial sum of per-row
# cosines and writes it broadcast across a single aligned (8, 128) tile, so
# every output store is a full, unmasked vst.
# ---------------------------------------------------------------------------
def _asym_partial_kernel(p_ref, z_ref, out_ref):
    p = p_ref[...].astype(jnp.float32)
    z = z_ref[...].astype(jnp.float32)

    # Raw row dots + squared norms; scale the small (tm, 1) result afterwards
    # (no full-width (tm, D) divide passes).  rsqrt (EUP) + mul instead of
    # sqrt + divide; clamping squared norms at 1e-24 == torch eps=1e-12.
    s = jnp.sum(p * z, axis=1, keepdims=True)     # (tm, 1)
    pp = jnp.sum(p * p, axis=1, keepdims=True)
    zz = jnp.sum(z * z, axis=1, keepdims=True)
    inv = jax.lax.rsqrt(jnp.maximum(pp, 1e-24)) * jax.lax.rsqrt(jnp.maximum(zz, 1e-24))

    part = jnp.sum(s * inv, axis=0, keepdims=True)          # (1, 1) block partial
    out_ref[...] = jnp.broadcast_to(part, out_ref.shape)    # lane-dense (8, 128)


def _asym_loss_fwd_pallas(p, z):
    n, d = p.shape
    itemsize = jnp.dtype(p.dtype).itemsize
    sub = 16 if itemsize < 4 else 8
    tm = _pick_rows(n, d * itemsize, budget=8 << 20, multiple=sub)
    grid = n // tm

    partials = pl.pallas_call(
        _asym_partial_kernel,
        out_shape=jax.ShapeDtypeStruct((8, grid * 128), jnp.float32),
        grid_spec=pltpu.PrefetchScalarGridSpec(
            num_scalar_prefetch=0,
            grid=(grid,),
            in_specs=[
                pl.BlockSpec((tm, d), lambda i: (i, 0)),
                pl.BlockSpec((tm, d), lambda i: (i, 0)),
            ],
            out_specs=pl.BlockSpec((8, 128), lambda i: (0, i)),
        ),
        compiler_params=_mosaic_params(2, tm * d * itemsize),
    )(p, z)

    # One partial per block (tiny); negate once on the reduced scalar.
    block_sums = partials[0].reshape(grid, 128)[:, 0]
    return -(jnp.sum(block_sums) / n)


# ---------------------------------------------------------------------------
# Kernel 2 (backward): fused closed-form VJP wrt p (z is detached)
#   dp = (-g/N) * inv_p * (z * inv_z - cos * inv_p * p)
# One streaming pass: reads p, z, writes dp; row reductions recomputed
# in-register (memory-bound slack), scale arrives as an SMEM scalar.
# ---------------------------------------------------------------------------
def _asym_bwd_kernel(scale_ref, p_ref, z_ref, dp_ref):
    p = p_ref[...].astype(jnp.float32)
    z = z_ref[...].astype(jnp.float32)

    s = jnp.sum(p * z, axis=1, keepdims=True)     # (tm, 1)
    pp = jnp.sum(p * p, axis=1, keepdims=True)
    zz = jnp.sum(z * z, axis=1, keepdims=True)
    inv_p = jax.lax.rsqrt(jnp.maximum(pp, 1e-24))
    inv_z = jax.lax.rsqrt(jnp.maximum(zz, 1e-24))
    cos = s * inv_p * inv_z

    scale = scale_ref[0]                          # = -g / N  (SMEM f32 scalar)
    dp = (scale * inv_p) * (z * inv_z - (cos * inv_p) * p)
    dp_ref[...] = dp.astype(dp_ref.dtype)


def _asym_loss_bwd_pallas(p, z, g):
    n, d = p.shape
    itemsize = jnp.dtype(p.dtype).itemsize
    sub = 16 if itemsize < 4 else 8
    tm = _pick_rows(n, d * itemsize, budget=4 << 20, multiple=sub)
    grid = n // tm
    scale = jnp.asarray(-g / n, jnp.float32).reshape(1)     # folds the -1/N mean

    return pl.pallas_call(
        _asym_bwd_kernel,
        out_shape=jax.ShapeDtypeStruct((n, d), p.dtype),
        grid_spec=pltpu.PrefetchScalarGridSpec(
            num_scalar_prefetch=0,
            grid=(grid,),
            in_specs=[
                pl.BlockSpec(memory_space=pltpu.MemorySpace.SMEM),   # scale scalar
                pl.BlockSpec((tm, d), lambda i: (i, 0)),
                pl.BlockSpec((tm, d), lambda i: (i, 0)),
            ],
            out_specs=pl.BlockSpec((tm, d), lambda i: (i, 0)),
        ),
        compiler_params=_mosaic_params(3, tm * d * itemsize),
    )(scale, p, z)


def _asym_loss_ref(p, z):
    # Pure-JAX reference mirroring the PyTorch asymmetric_loss (z detached).
    pn = p / jnp.maximum(jnp.linalg.norm(p, axis=1, keepdims=True), 1e-12)
    zn = z / jnp.maximum(jnp.linalg.norm(z, axis=1, keepdims=True), 1e-12)
    return -jnp.mean(jnp.sum(pn * zn, axis=1))


@jax.custom_vjp
def asymmetric_loss(p, z):
    # z is treated as detached (torch: z = z.detach()).
    return _asym_loss_fwd_pallas(p, z)


def _asym_fwd(p, z):
    return _asym_loss_fwd_pallas(p, z), (p, z)


def _asym_bwd(res, g):
    p, z = res
    dp = _asym_loss_bwd_pallas(p, z, g)
    return dp, jnp.zeros_like(z)        # zero grad to z == .detach()


asymmetric_loss.defvjp(_asym_fwd, _asym_bwd)


# ---------------------------------------------------------------------------
# Kernel 3: FGSM step  adv = x + eps * sign(grad)
# ---------------------------------------------------------------------------
def _fgsm_kernel(eps, x_ref, g_ref, out_ref):
    x = x_ref[...].astype(jnp.float32)
    g = g_ref[...].astype(jnp.float32)
    out_ref[...] = (x + eps * jnp.sign(g)).astype(out_ref.dtype)


def fgsm_step(x, grad, eps):
    eps = float(eps)
    orig_shape = x.shape
    rows, cols = _lane_dense_2d(x.size)          # lane-dense, cols = k*128
    x2 = x.reshape(rows, cols)
    g2 = grad.reshape(rows, cols)

    itemsize = jnp.dtype(x.dtype).itemsize
    sub = 16 if itemsize < 4 else 8
    tm = _pick_rows(rows, cols * itemsize, budget=4 << 20, multiple=sub)
    grid = rows // tm

    out = pl.pallas_call(
        functools.partial(_fgsm_kernel, eps),
        out_shape=jax.ShapeDtypeStruct((rows, cols), x.dtype),
        grid_spec=pltpu.PrefetchScalarGridSpec(
            num_scalar_prefetch=0,
            grid=(grid,),
            in_specs=[
                pl.BlockSpec((tm, cols), lambda i: (i, 0)),
                pl.BlockSpec((tm, cols), lambda i: (i, 0)),
            ],
            out_specs=pl.BlockSpec((tm, cols), lambda i: (i, 0)),
        ),
        compiler_params=_mosaic_params(3, tm * cols * itemsize),
    )(x2, g2)
    return out.reshape(orig_shape)


# ---------------------------------------------------------------------------
# Stand-in model + CL_FGSM forward
# ---------------------------------------------------------------------------
def init_standin_model(key, in_dim, feat_dim=256, proj_dim=128):
    k1, k2, k3 = jax.random.split(key, 3)
    return {
        "w_enc": jax.random.normal(k1, (in_dim, feat_dim), jnp.float32) * (in_dim ** -0.5),
        "w_proj": jax.random.normal(k2, (feat_dim, proj_dim), jnp.float32) * (feat_dim ** -0.5),
        "w_pred": jax.random.normal(k3, (proj_dim, proj_dim), jnp.float32) * (proj_dim ** -0.5),
    }


def standin_model(params, x):
    # TODO(synk): CL_FGSM wraps an arbitrary external SimSiam model passed to
    # __init__; it has no in-script definition, so this tiny deterministic
    # encoder/projector/predictor stand-in is used to exercise the forward.
    h = x.reshape(x.shape[0], -1)
    f = jnp.tanh(h @ params["w_enc"])
    z = f @ params["w_proj"]            # "z" head
    p = jnp.tanh(z) @ params["w_pred"]  # "p" (predictor) head
    return p, z


def cl_fgsm_forward(params, x1, x2, eps):
    # self.model.eval(): stand-in has no dropout/batch-norm -> no-op.
    def total_loss(x1_):
        p1, z1 = standin_model(params, x1_)
        p2, z2 = standin_model(params, x2)
        l1 = asymmetric_loss(p1, jax.lax.stop_gradient(z2))  # z2.detach()
        l2 = asymmetric_loss(p2, jax.lax.stop_gradient(z1))  # z1.detach()
        return 0.5 * l1 + 0.5 * l2

    loss, grad = jax.value_and_grad(total_loss)(x1)  # x1.requires_grad; loss.backward()
    adv_x1 = fgsm_step(x1, grad, eps)                # x1 + eps * grad.sign()
    return adv_x1, loss, grad


def cl_fgsm_reference(params, x1, x2, eps):
    # Pure-JAX end-to-end reference of the same forward.
    def total_loss(x1_):
        p1, z1 = standin_model(params, x1_)
        p2, z2 = standin_model(params, x2)
        l1 = _asym_loss_ref(p1, jax.lax.stop_gradient(z2))
        l2 = _asym_loss_ref(p2, jax.lax.stop_gradient(z1))
        return 0.5 * l1 + 0.5 * l2

    loss, grad = jax.value_and_grad(total_loss)(x1)
    return x1 + eps * jnp.sign(grad), loss, grad


if __name__ == "__main__":
    key = jax.random.PRNGKey(0)
    k_m, k_x1, k_x2 = jax.random.split(key, 3)

    B, C, H, W = 8, 3, 16, 16
    eps = 8.0 / 255.0

    x1 = jax.random.normal(k_x1, (B, C, H, W), jnp.float32)
    x2 = jax.random.normal(k_x2, (B, C, H, W), jnp.float32)
    params = init_standin_model(k_m, C * H * W)

    adv_x1, loss, grad = cl_fgsm_forward(params, x1, x2, eps)
    jax.block_until_ready(adv_x1)
    jax.block_until_ready(loss)

    adv_ref, loss_ref, grad_ref = cl_fgsm_reference(params, x1, x2, eps)

    assert jnp.allclose(loss, loss_ref, atol=1e-5, rtol=1e-5), (loss, loss_ref)
    assert jnp.allclose(grad, grad_ref, atol=1e-6, rtol=1e-4), float(
        jnp.max(jnp.abs(grad - grad_ref)))
    # sign() is only well defined away from 0; compare the FGSM step wherever
    # the reference gradient is not numerically zero.
    stable = jnp.abs(grad_ref) > 1e-6
    assert bool(jnp.all(jnp.where(stable, jnp.abs(adv_x1 - adv_ref) <= 1e-5, True)))

    # Standalone checks of the Pallas loss forward and fused backward kernels.
    p1, _ = standin_model(params, x1)
    _, z2 = standin_model(params, x2)
    l_k = asymmetric_loss(p1, z2)
    l_r = _asym_loss_ref(p1, z2)
    assert jnp.allclose(l_k, l_r, atol=1e-5, rtol=1e-5), (l_k, l_r)
    gp_k = jax.grad(lambda q: asymmetric_loss(q, z2))(p1)
    gp_r = jax.grad(lambda q: _asym_loss_ref(q, z2))(p1)
    assert jnp.allclose(gp_k, gp_r, atol=1e-6, rtol=1e-4), float(
        jnp.max(jnp.abs(gp_k - gp_r)))

    print("KERNEL_OK")
</pallas_src>

<mosaic_0001>
module attributes {stable_mosaic.version = 11 : i64} {
  func.func @_asym_partial_kernel(%arg0: i32, %arg1: memref<8x128xf32, #tpu.memory_space<vmem>>, %arg2: memref<8x128xf32, #tpu.memory_space<vmem>>, %arg3: memref<8x128xf32, #tpu.memory_space<vmem>>) attributes {dimension_semantics = [#tpu.dimension_semantics<parallel>], iteration_bounds = array<i64: 1>, scalar_prefetch = 0 : i64, scratch_operands = 0 : i64, tpu.core_type = #tpu.core_type<tc>, window_params = [{transform_indices = @transform_0, window_bounds = array<i64: 8, 128>}, {transform_indices = @transform_1, window_bounds = array<i64: 8, 128>}, {transform_indices = @transform_2, window_bounds = array<i64: 8, 128>}]} {
    %c0 = arith.constant 0 : index
    %c0_0 = arith.constant 0 : index
    %0 = vector.load %arg1[%c0, %c0_0] : memref<8x128xf32, #tpu.memory_space<vmem>>, vector<8x128xf32>
    %c0_1 = arith.constant 0 : index
    %c0_2 = arith.constant 0 : index
    %1 = vector.load %arg2[%c0_1, %c0_2] : memref<8x128xf32, #tpu.memory_space<vmem>>, vector<8x128xf32>
    %2 = arith.mulf %0, %1 : vector<8x128xf32>
    %cst = arith.constant dense<0.000000e+00> : vector<8xf32>
    %3 = vector.multi_reduction <add>, %2, %cst [1] : vector<8x128xf32> to vector<8xf32>
    %4 = vector.shape_cast %3 : vector<8xf32> to vector<8x1xf32>
    %5 = arith.mulf %0, %0 : vector<8x128xf32>
    %cst_3 = arith.constant dense<0.000000e+00> : vector<8xf32>
    %6 = vector.multi_reduction <add>, %5, %cst_3 [1] : vector<8x128xf32> to vector<8xf32>
    %7 = vector.shape_cast %6 : vector<8xf32> to vector<8x1xf32>
    %8 = arith.mulf %1, %1 : vector<8x128xf32>
    %cst_4 = arith.constant dense<0.000000e+00> : vector<8xf32>
    %9 = vector.multi_reduction <add>, %8, %cst_4 [1] : vector<8x128xf32> to vector<8xf32>
    %10 = vector.shape_cast %9 : vector<8xf32> to vector<8x1xf32>
    %cst_5 = arith.constant 1.000000e-24 : f32
    %11 = vector.broadcast %cst_5 : f32 to vector<8x1xf32>
    %12 = arith.maximumf %7, %11 : vector<8x1xf32>
    %13 = math.rsqrt %12 : vector<8x1xf32>
    %cst_6 = arith.constant 1.000000e-24 : f32
    %14 = vector.broadcast %cst_6 : f32 to vector<8x1xf32>
    %15 = arith.maximumf %10, %14 : vector<8x1xf32>
    %16 = math.rsqrt %15 : vector<8x1xf32>
    %17 = arith.mulf %13, %16 : vector<8x1xf32>
    %18 = arith.mulf %4, %17 : vector<8x1xf32>
    %cst_7 = arith.constant dense<0.000000e+00> : vector<1xf32>
    %19 = vector.multi_reduction <add>, %18, %cst_7 [0] : vector<8x1xf32> to vector<1xf32>
    %20 = vector.shape_cast %19 : vector<1xf32> to vector<1x1xf32>
    %21 = vector.shape_cast %20 : vector<1x1xf32> to vector<1x1xf32>
    %22 = vector.broadcast %21 : vector<1x1xf32> to vector<8x128xf32>
    %c0_8 = arith.constant 0 : index
    %c0_9 = arith.constant 0 : index
    %23 = vector.load %arg3[%c0_8, %c0_9] : memref<8x128xf32, #tpu.memory_space<vmem>>, vector<8x128xf32>
    tpu.vector_store %arg3[%c0_8, %c0_9], %22 {strides = array<i32>} : memref<8x128xf32, #tpu.memory_space<vmem>>, vector<8x128xf32>,
    return
  }
  func.func @transform_0(%arg0: i32) -> (i32, i32) {
    %c0_i32 = arith.constant 0 : i32
    %c0_i32_0 = arith.constant 0 : i32
    return %arg0, %c0_i32 : i32, i32
  }
  func.func @transform_1(%arg0: i32) -> (i32, i32) {
    %c0_i32 = arith.constant 0 : i32
    %c0_i32_0 = arith.constant 0 : i32
    return %arg0, %c0_i32 : i32, i32
  }
  func.func @transform_2(%arg0: i32) -> (i32, i32) {
    %c0_i32 = arith.constant 0 : i32
    %c0_i32_0 = arith.constant 0 : i32
    return %c0_i32, %arg0 : i32, i32
  }
}

</mosaic_0001>

<llo_original>
// kernel: tpu_custom_call.1
$region0: #{tpu_custom_call.1}
  #allocation0 [shape = 'u32[]', space=smem, size = 0x4, offset = 0x4, fixed_abs, tag = 'smem constant byte address 0x4 - core index']
  #allocation1 [shape = 'u32[144,128]{1,0:T(1,128)}', space=vmem, size = 0x12000, scoped, tag = 'internal scratch']
  %s0 = inlined_call_operand.hbm [shape: f32[8,128], index: 0, kind: input, shape index: {}]
  %s1 = inlined_call_operand.hbm [shape: f32[8,128], index: 1, kind: input, shape index: {}]
  %s2 = inlined_call_operand.hbm [shape: f32[8,128], index: 2, kind: output, shape index: {}]
  %s3 = sld [smem:[#allocation0]]
  $region26: #{tpu_custom_call.1} parent=0
    _
  %s5 = ssub.s32 1, %s3
  %s6 = scalar_select 0, %s5, %s3
  $region1: #{tpu_custom_call.1} parent=0
    #allocation2 [shape = 'u8[4096]{0}', space=vmem, size = 0x1000, scoped, tag = 'input window, operand 0, single buffered']
    #allocation3 [shape = 's32[1]{0}', space=sflag, size = 0x4, scoped, tag = 'scoped memory for tpu_custom_call.1']
    #allocation4 [shape = 's32[1]{0}', space=sflag, size = 0x4, scoped, tag = 'scoped memory for tpu_custom_call.1']
    #allocation5 [shape = 'u8[4096]{0}', space=vmem, size = 0x1000, scoped, tag = 'input window, operand 1, single buffered']
    #allocation6 [shape = 's32[1]{0}', space=sflag, size = 0x4, scoped, tag = 'scoped memory for tpu_custom_call.1']
    #allocation7 [shape = 'u8[4096]{0}', space=vmem, size = 0x1000, scoped, tag = 'output window, operand 0, single buffered']
    %7 = vsyncpa [#allocation3], 0
    %8 = vsyncpa [#allocation6], 0
    %9 = vsyncpa [#allocation4], 0
    // Predicated region
    $region2: #{tpu_custom_call.1} parent=1 // pred_check
      _
    $region3: #{tpu_custom_call.1} parent=1 // pred_check_branch
      %11 = sbr.rel (0) target = $region5
    $region4: #{tpu_custom_call.1} parent=1 // pred_region
      %s13 = ssub.s32 128, 128
      %14 = vsyncadd [#allocation3], %s13
      %s16 = sshll.u32 [#allocation2], 4
      %s17 = int_to_ptr.vmem [resolvable:$true] %s16
      %19 = dma.hbm_to_vmem [thread:$0]  %s0, 128, %s17, [#allocation3]
    $region5: #{tpu_custom_call.1} parent=1 // pred_fallthru
      _
    // Predicated region
    $region6: #{tpu_custom_call.1} parent=1 // pred_check
      _
    $region7: #{tpu_custom_call.1} parent=1 // pred_check_branch
      %21 = sbr.rel (0) target = $region9
    $region8: #{tpu_custom_call.1} parent=1 // pred_region
      %s23 = ssub.s32 128, 128
      %24 = vsyncadd [#allocation6], %s23
      %s26 = sshll.u32 [#allocation5], 4
      %s27 = int_to_ptr.vmem [resolvable:$true] %s26
      %29 = dma.hbm_to_vmem [thread:$0]  %s1, 128, %s27, [#allocation6]
    $region9: #{tpu_custom_call.1} parent=1 // pred_fallthru
      _
    // Predicated region
    $region10: #{tpu_custom_call.1} parent=1 // pred_check
      _
    $region11: #{tpu_custom_call.1} parent=1 // pred_check_branch
      %31 = sbr.rel (0) target = $region13
    $region12: #{tpu_custom_call.1} parent=1 // pred_region
      %32 = dma.done [#allocation3], 128
    $region13: #{tpu_custom_call.1} parent=1 // pred_fallthru
      _
    // Predicated region
    $region14: #{tpu_custom_call.1} parent=1 // pred_check
      _
    $region15: #{tpu_custom_call.1} parent=1 // pred_check_branch
      %34 = sbr.rel (0) target = $region17
    $region16: #{tpu_custom_call.1} parent=1 // pred_region
      %35 = dma.done [#allocation6], 128
    $region17: #{tpu_custom_call.1} parent=1 // pred_fallthru
      _
    %v36 = vld [vmem:[#allocation2] sm:$0xff]
    %v37 = vld [vmem:[#allocation5] sm:$0xff]
    %v38 = vmul.f32 %v36, %v37
    %39 = vadd.xlane.f32.xlu0 %v38
    %v40 = vpop.xlane.xlu0 %39
    %v41 = vmul.f32 %v36, %v36
    %42 = vadd.xlane.f32.xlu0 %v41
    %v43 = vpop.xlane.xlu0 %42
    %v44 = vmul.f32 %v37, %v37
    %45 = vadd.xlane.f32.xlu0 %v44
    %v46 = vpop.xlane.xlu0 %45
    %v47 = vmax.f32 %v43, 1e-24
    %v48 = vrsqrt.pop %v47
    %v49 = vmax.f32 %v46, 1e-24
    %v50 = vrsqrt.pop %v49
    %v51 = vmul.f32 %v48, %v50
    %v52 = vmul.f32 %v40, %v51
    %v53 = vrot.slane %v52, 4
    %v54 = vadd.f32 %v52, %v53
    %v55 = vrot.slane %v54, 2
    %v56 = vadd.f32 %v54, %v55
    %v57 = vrot.slane %v56, 1
    %v58 = vadd.f32 %v56, %v57
    %59 = vst [vmem:[#allocation7] sm:$0xff] %v58
    // Predicated region
    $region18: #{tpu_custom_call.1} parent=1 // pred_check
      _
    $region19: #{tpu_custom_call.1} parent=1 // pred_check_branch
      %61 = sbr.rel (0) target = $region21
    $region20: #{tpu_custom_call.1} parent=1 // pred_region
      %s63 = ssub.s32 128, 128
      %64 = vsyncadd [#allocation4], %s63
      %s66 = sshll.u32 [#allocation7], 4
      %s67 = int_to_ptr.vmem [resolvable:$true] %s66
      %69 = dma.vmem_to_hbm [thread:$0]  %s67, 128, %s2, [#allocation4]
    $region21: #{tpu_custom_call.1} parent=1 // pred_fallthru
      _
    // Predicated region
    $region22: #{tpu_custom_call.1} parent=1 // pred_check
      _
    $region23: #{tpu_custom_call.1} parent=1 // pred_check_branch
      %71 = sbr.rel (0) target = $region25
    $region24: #{tpu_custom_call.1} parent=1 // pred_region
      %72 = dma.done [#allocation4], 128
    $region25: #{tpu_custom_call.1} parent=1 // pred_fallthru
      _
    %73 = vsyncpa [#allocation3], 1
    %74 = vsyncpa [#allocation6], 1
    %75 = vsyncpa [#allocation4], 1

</llo_original>
